<compile_context>
chip_gen: v6e
topology: v6e:2x2x1
jax: 0.10.0
libtpu: 0.0.40
codegen_flags: <defaults>
</compile_context>

<pallas_src>
import functools

import jax
import jax.numpy as jnp
from jax import lax
from jax.experimental import pallas as pl
from jax.experimental.pallas import tpu as pltpu


def _round_up(x, m):
    return (x + m - 1) // m * m


def supcon_loss_kernel(slab_ref, proto_ref, out_ref, *,
                       temperature, pos_thresh, num_cls, protos_per_cls,
                       c_pad, feat_dim, tile_t, n_frames, padded_t):
    # slab lanes: [0, c_pad)         -> pseudo-label probs (K real lanes + zeros)
    #             [c_pad, c_pad + D) -> student features (compute dtype)
    probs = slab_ref[:, :c_pad].astype(jnp.float32)               # [Tt, Cp]
    stu = slab_ref[:, c_pad:c_pad + feat_dim]                     # [Tt, D]

    # ---- one MXU matmul for all (frame, prototype) similarities ----
    sim_flat = jnp.dot(stu, proto_ref[...],
                       preferred_element_type=jnp.float32)        # [Tt, P*Cp]

    # per-class max over prototypes: P lane-aligned slices (c_pad % 128 == 0)
    sim = sim_flat[:, :c_pad]
    for p in range(1, protos_per_cls):                            # static, tiny
        sim = jnp.maximum(sim, sim_flat[:, p * c_pad:(p + 1) * c_pad])
    sim = sim * (1.0 / temperature)                               # [Tt, Cp]

    # mask padded class lanes out of the softmax (finite big-negative so the
    # 0 * logits products in the masked reduction below stay finite)
    lane = lax.broadcasted_iota(jnp.int32, (tile_t, c_pad), 1)
    sim = jnp.where(lane < num_cls, sim, jnp.float32(-1e30))

    logits_max = jnp.max(sim, axis=1, keepdims=True)              # [Tt, 1]
    logits = sim - logits_max
    log_z = jnp.log(1e-07 + jnp.sum(jnp.exp(logits), axis=1, keepdims=True))

    # ---- positive mask, full-width in class-lane space (no lane concat) ----
    # torch: p[p > t] = 1 ; p[p < t] = 0  (values exactly == t unchanged)
    def _thresh(x):
        return jnp.where(x > pos_thresh, 1.0, jnp.where(x < pos_thresh, 0.0, x))

    k_fg = num_cls - 1                                            # fg classes
    bg = 1.0 - jnp.max(jnp.where(lane < k_fg, probs, -jnp.inf),
                       axis=1, keepdims=True)                     # [Tt, 1]
    mask = _thresh(probs)                       # fg lanes; padded lanes -> 0
    mask = jnp.where(lane == k_fg, _thresh(bg), mask)             # bg at lane K

    # sum(mask * log_prob) == sum(mask * logits) - log_z * sum(mask)
    num = jnp.sum(mask * logits, axis=1, keepdims=True)           # [Tt, 1]
    den = jnp.sum(mask, axis=1, keepdims=True)                    # [Tt, 1]
    per_frame = -(num - log_z * den) * pl.reciprocal(den + 1e-07, approx=True)

    # zero padded frame rows (only generated when T was padded to a tile mult.)
    if padded_t != n_frames:
        rows = (pl.program_id(0) * tile_t
                + lax.broadcasted_iota(jnp.int32, (tile_t, 1), 0))
        per_frame = jnp.where(rows < n_frames, per_frame, 0.0)

    # per-tile partial sum, written as a lane-dense (1, 8, 128) broadcast tile
    out_ref[...] = jnp.full(out_ref.shape, jnp.sum(per_frame), jnp.float32)


@functools.partial(
    jax.jit, static_argnames=("temperature", "pos_thresh", "compute_dtype"))
def supcon_loss(features_stu, pseudo_lb_stu, features_proto, lb_proto=None,
                temperature=0.1, pos_thresh=0.9, compute_dtype=jnp.bfloat16):
    del lb_proto  # not used by the reference forward pass
    T, D = features_stu.shape
    K = pseudo_lb_stu.shape[1]
    C, P, Dp = features_proto.shape
    assert Dp == D and C == K + 1

    c_pad = _round_up(C, 128)

    # ---- layout plumbing (wrapper only) ------------------------------------
    # prototypes: [C,P,D] -> [D,P,C_pad] -> [D, P*C_pad]; zero columns for the
    # padded classes; column index = p*C_pad + c so the in-kernel per-class max
    # uses lane-aligned slices.
    proto = jnp.transpose(features_proto, (2, 1, 0))               # [D, P, C]
    proto = jnp.pad(proto, ((0, 0), (0, 0), (0, c_pad - C)))       # [D, P, Cp]
    proto = proto.reshape(D, P * c_pad).astype(compute_dtype)

    # one slab per frame: [probs (C_pad lanes) | features (D lanes)] so the
    # label stream does not cost its own lane-padded DMA.
    probs = jnp.pad(pseudo_lb_stu.astype(jnp.float32),
                    ((0, 0), (0, c_pad - K)))                      # [T, C_pad]
    slab = jnp.concatenate(
        [probs, features_stu.astype(jnp.float32)], axis=1)         # [T, Cp+D]
    slab = slab.astype(compute_dtype)
    row_w = c_pad + D

    # ---- frame tiling: biggest tile within a VMEM budget safe on v5e/v6e/v7x
    itemsize = jnp.dtype(compute_dtype).itemsize
    row_bytes = row_w * itemsize
    proto_bytes = D * P * c_pad * itemsize
    budget = 24 << 20                        # conservative across generations
    tile_t = min(1024, _round_up(T, 8))
    while tile_t > 8 and 2 * tile_t * row_bytes + 2 * proto_bytes > budget:
        tile_t = _round_up(tile_t // 2, 8)
    padded_t = _round_up(T, tile_t)
    if padded_t != T:
        slab = jnp.pad(slab, ((0, padded_t - T), (0, 0)))
    num_tiles = padded_t // tile_t

    vmem_limit = int(min(
        48 << 20,
        max(16 << 20, 2 * tile_t * row_bytes + 2 * proto_bytes + (4 << 20))))
    # TODO(synk): for very large prototype banks (P*C_pad*D >> 20 MiB, v7x 64MiB
    # VMEM) tile the class axis with an extra grid dim instead of keeping the
    # prototype matrix fully resident.

    kernel = functools.partial(
        supcon_loss_kernel,
        temperature=float(temperature), pos_thresh=float(pos_thresh),
        num_cls=C, protos_per_cls=P, c_pad=c_pad, feat_dim=D,
        tile_t=tile_t, n_frames=T, padded_t=padded_t)

    partials = pl.pallas_call(
        kernel,
        out_shape=jax.ShapeDtypeStruct((num_tiles, 8, 128), jnp.float32),
        grid_spec=pltpu.PrefetchScalarGridSpec(
            num_scalar_prefetch=0,
            grid=(num_tiles,),
            in_specs=[
                pl.BlockSpec((tile_t, row_w), lambda i: (i, 0)),   # packed slab
                pl.BlockSpec((D, P * c_pad), lambda i: (0, 0)),    # prototypes
            ],
            out_specs=pl.BlockSpec((1, 8, 128), lambda i: (i, 0, 0)),
        ),
        compiler_params=pltpu.CompilerParams(
            dimension_semantics=("parallel",),
            vmem_limit_bytes=vmem_limit),
    )(slab, proto)

    # tiny final mean over frames done in JAX (one scalar per tile)
    return jnp.sum(partials[:, 0, 0]) / T


def supcon_loss_ref(features_stu, pseudo_lb_stu, features_proto, lb_proto=None,
                    temperature=0.1, pos_thresh=0.9):
    """Pure-JAX reference mirroring the PyTorch forward."""
    del lb_proto
    bg = 1.0 - jnp.max(pseudo_lb_stu, axis=1, keepdims=True)
    probs = jnp.concatenate([pseudo_lb_stu, bg], axis=1)
    mask = jnp.where(probs > pos_thresh, 1.0,
                     jnp.where(probs < pos_thresh, 0.0, probs))
    sim = jnp.einsum("cpd,td->tcp", features_proto, features_stu,
                     precision=lax.Precision.HIGHEST)
    sim = jnp.max(sim, axis=2) / temperature
    logits_max = jnp.max(sim, axis=1, keepdims=True)
    logits = sim - logits_max
    exp_logits = jnp.exp(logits)
    log_prob = logits - jnp.log(1e-07 + jnp.sum(exp_logits, axis=1, keepdims=True))
    mean_log_prob_pos = (mask * log_prob).sum(1) / (mask.sum(1) + 1e-07)
    return jnp.mean(-mean_log_prob_pos)


if __name__ == "__main__":
    key = jax.random.PRNGKey(0)
    k1, k2, k3 = jax.random.split(key, 3)

    T, D, K, P = 8, 32, 4, 2      # frames, feat-dim, fg classes, protos/class
    C = K + 1                     # fg classes + background

    features_stu = jax.random.normal(k1, (T, D), jnp.float32)
    features_stu = features_stu / jnp.linalg.norm(features_stu, axis=-1, keepdims=True)

    features_proto = jax.random.normal(k2, (C, P, D), jnp.float32)
    features_proto = features_proto / jnp.linalg.norm(features_proto, axis=-1, keepdims=True)

    pseudo_lb_stu = jax.nn.softmax(
        4.0 * jax.random.normal(k3, (T, K), jnp.float32), axis=-1)

    lb_proto = jnp.repeat(jnp.arange(C), P).reshape(C, P)  # unused by forward

    loss = supcon_loss(features_stu, pseudo_lb_stu, features_proto, lb_proto)
    jax.block_until_ready(loss)

    # Reference evaluated at the same (bf16-rounded) input precision the kernel
    # uses for its feature/label DMA, so the comparison stays tight.
    f32 = jnp.float32
    ref = supcon_loss_ref(
        features_stu.astype(jnp.bfloat16).astype(f32),
        pseudo_lb_stu.astype(jnp.bfloat16).astype(f32),
        features_proto.astype(jnp.bfloat16).astype(f32),
        lb_proto)
    assert jnp.allclose(loss, ref, atol=2e-3, rtol=2e-3), (loss, ref)

    print("KERNEL_OK")
</pallas_src>

<mosaic_0001>
module attributes {stable_mosaic.version = 11 : i64} {
  func.func @supcon_loss_kernel(%arg0: i32, %arg1: memref<8x160xbf16, #tpu.memory_space<vmem>>, %arg2: memref<32x256xbf16, #tpu.memory_space<vmem>>, %arg3: memref<1x8x128xf32, #tpu.memory_space<vmem>>) attributes {dimension_semantics = [#tpu.dimension_semantics<parallel>], iteration_bounds = array<i64: 1>, scalar_prefetch = 0 : i64, scratch_operands = 0 : i64, tpu.core_type = #tpu.core_type<tc>, window_params = [{transform_indices = @transform_0, window_bounds = array<i64: 8, 160>}, {pipeline_mode = #tpu.pipeline_mode<synchronous>, transform_indices = @transform_1, window_bounds = array<i64: 32, 256>}, {transform_indices = @transform_2, window_bounds = array<i64: 1, 8, 128>}]} {
    %c0 = arith.constant 0 : index
    %c0_0 = arith.constant 0 : index
    %0 = vector.load %arg1[%c0, %c0_0] : memref<8x160xbf16, #tpu.memory_space<vmem>>, vector<8x128xbf16>
    %1 = arith.extf %0 : vector<8x128xbf16> to vector<8x128xf32>
    %c0_1 = arith.constant 0 : index
    %c128 = arith.constant 128 : index
    %2 = vector.load %arg1[%c0_1, %c128] : memref<8x160xbf16, #tpu.memory_space<vmem>>, vector<8x32xbf16>
    %c0_2 = arith.constant 0 : index
    %c0_3 = arith.constant 0 : index
    %3 = vector.load %arg2[%c0_2, %c0_3] : memref<32x256xbf16, #tpu.memory_space<vmem>>, vector<32x256xbf16>
    %cst = arith.constant dense<0.000000e+00> : vector<8x256xf32>
    %4 = tpu.matmul %2, %3, %cst {dimension_numbers = #tpu.dot_dimension_numbers<[1], [0], [0], [1], [0, 0, 1, 1], [], []>} : vector<8x32xbf16>, vector<32x256xbf16>, vector<8x256xf32> -> vector<8x256xf32>
    %5 = vector.extract_strided_slice %4 {offsets = [0, 0], sizes = [8, 128], strides = [1, 1]} : vector<8x256xf32> to vector<8x128xf32>
    %6 = vector.extract_strided_slice %4 {offsets = [0, 128], sizes = [8, 128], strides = [1, 1]} : vector<8x256xf32> to vector<8x128xf32>
    %7 = arith.maximumf %5, %6 : vector<8x128xf32>
    %cst_4 = arith.constant 1.000000e+01 : f32
    %8 = vector.broadcast %cst_4 : f32 to vector<8x128xf32>
    %9 = arith.mulf %7, %8 : vector<8x128xf32>
    %10 = tpu.iota {dimensions = array<i32: 1>} : vector<8x128xi32>
    %c5_i32 = arith.constant 5 : i32
    %11 = vector.broadcast %c5_i32 : i32 to vector<8x128xi32>
    %12 = arith.cmpi slt, %10, %11 : vector<8x128xi32>
    %cst_5 = arith.constant -1.000000e+30 : f32
    %13 = vector.broadcast %cst_5 : f32 to vector<8x128xf32>
    %14 = arith.select %12, %9, %13 : vector<8x128xi1>, vector<8x128xf32>
    %cst_6 = arith.constant dense<0xFF800000> : vector<8xf32>
    %15 = vector.multi_reduction <maximumf>, %14, %cst_6 [1] : vector<8x128xf32> to vector<8xf32>
    %16 = vector.shape_cast %15 : vector<8xf32> to vector<8x1xf32>
    %17 = vector.broadcast %16 : vector<8x1xf32> to vector<8x128xf32>
    %18 = arith.subf %14, %17 : vector<8x128xf32>
    %19 = math.exp %18 : vector<8x128xf32>
    %cst_7 = arith.constant dense<0.000000e+00> : vector<8xf32>
    %20 = vector.multi_reduction <add>, %19, %cst_7 [1] : vector<8x128xf32> to vector<8xf32>
    %21 = vector.shape_cast %20 : vector<8xf32> to vector<8x1xf32>
    %cst_8 = arith.constant 1.000000e-07 : f32
    %22 = vector.broadcast %cst_8 : f32 to vector<8x1xf32>
    %23 = arith.addf %22, %21 : vector<8x1xf32>
    %24 = math.log %23 : vector<8x1xf32>
    %c4_i32 = arith.constant 4 : i32
    %25 = vector.broadcast %c4_i32 : i32 to vector<8x128xi32>
    %26 = arith.cmpi slt, %10, %25 : vector<8x128xi32>
    %cst_9 = arith.constant 0xFF800000 : f32
    %27 = vector.broadcast %cst_9 : f32 to vector<8x128xf32>
    %28 = arith.select %26, %1, %27 : vector<8x128xi1>, vector<8x128xf32>
    %cst_10 = arith.constant dense<0xFF800000> : vector<8xf32>
    %29 = vector.multi_reduction <maximumf>, %28, %cst_10 [1] : vector<8x128xf32> to vector<8xf32>
    %30 = vector.shape_cast %29 : vector<8xf32> to vector<8x1xf32>
    %cst_11 = arith.constant 1.000000e+00 : f32
    %31 = vector.broadcast %cst_11 : f32 to vector<8x1xf32>
    %32 = arith.subf %31, %30 : vector<8x1xf32>
    %cst_12 = arith.constant 0.899999976 : f32
    %33 = vector.broadcast %cst_12 : f32 to vector<8x128xf32>
    %34 = arith.cmpf ogt, %1, %33 : vector<8x128xf32>
    %cst_13 = arith.constant 0.899999976 : f32
    %35 = vector.broadcast %cst_13 : f32 to vector<8x128xf32>
    %36 = arith.cmpf olt, %1, %35 : vector<8x128xf32>
    %cst_14 = arith.constant 0.000000e+00 : f32
    %37 = vector.broadcast %cst_14 : f32 to vector<8x128xf32>
    %38 = arith.select %36, %37, %1 : vector<8x128xi1>, vector<8x128xf32>
    %cst_15 = arith.constant 1.000000e+00 : f32
    %39 = vector.broadcast %cst_15 : f32 to vector<8x128xf32>
    %40 = arith.select %34, %39, %38 : vector<8x128xi1>, vector<8x128xf32>
    %c4_i32_16 = arith.constant 4 : i32
    %41 = vector.broadcast %c4_i32_16 : i32 to vector<8x128xi32>
    %42 = arith.cmpi eq, %10, %41 : vector<8x128xi32>
    %cst_17 = arith.constant 0.899999976 : f32
    %43 = vector.broadcast %cst_17 : f32 to vector<8x1xf32>
    %44 = arith.cmpf ogt, %32, %43 : vector<8x1xf32>
    %cst_18 = arith.constant 0.899999976 : f32
    %45 = vector.broadcast %cst_18 : f32 to vector<8x1xf32>
    %46 = arith.cmpf olt, %32, %45 : vector<8x1xf32>
    %cst_19 = arith.constant 0.000000e+00 : f32
    %47 = vector.broadcast %cst_19 : f32 to vector<8x1xf32>
    %48 = arith.select %46, %47, %32 : vector<8x1xi1>, vector<8x1xf32>
    %cst_20 = arith.constant 1.000000e+00 : f32
    %49 = vector.broadcast %cst_20 : f32 to vector<8x1xf32>
    %50 = arith.select %44, %49, %48 : vector<8x1xi1>, vector<8x1xf32>
    %51 = vector.shape_cast %50 : vector<8x1xf32> to vector<8x1xf32>
    %52 = vector.broadcast %51 : vector<8x1xf32> to vector<8x128xf32>
    %53 = arith.select %42, %52, %40 : vector<8x128xi1>, vector<8x128xf32>
    %54 = arith.mulf %53, %18 : vector<8x128xf32>
    %cst_21 = arith.constant dense<0.000000e+00> : vector<8xf32>
    %55 = vector.multi_reduction <add>, %54, %cst_21 [1] : vector<8x128xf32> to vector<8xf32>
    %56 = vector.shape_cast %55 : vector<8xf32> to vector<8x1xf32>
    %cst_22 = arith.constant dense<0.000000e+00> : vector<8xf32>
    %57 = vector.multi_reduction <add>, %53, %cst_22 [1] : vector<8x128xf32> to vector<8xf32>
    %58 = vector.shape_cast %57 : vector<8xf32> to vector<8x1xf32>
    %59 = arith.mulf %24, %58 : vector<8x1xf32>
    %60 = arith.subf %56, %59 : vector<8x1xf32>
    %cst_23 = arith.constant 0.000000e+00 : f32
    %61 = vector.broadcast %cst_23 : f32 to vector<8x1xf32>
    %62 = arith.subf %61, %60 : vector<8x1xf32>
    %cst_24 = arith.constant 1.000000e-07 : f32
    %63 = vector.broadcast %cst_24 : f32 to vector<8x1xf32>
    %64 = arith.addf %58, %63 : vector<8x1xf32>
    %65 = tpu.reciprocal %64 {approx = true} : vector<8x1xf32> -> vector<8x1xf32>
    %66 = arith.mulf %62, %65 : vector<8x1xf32>
    %67 = vector.shape_cast %66 : vector<8x1xf32> to vector<1x8x1xf32>
    %cst_25 = arith.constant dense<0.000000e+00> : vector<1xf32>
    %68 = vector.multi_reduction <add>, %67, %cst_25 [1, 2] : vector<1x8x1xf32> to vector<1xf32>
    %69 = vector.shape_cast %68 : vector<1xf32> to vector<1x1x1xf32>
    %70 = vector.extract %69[0, 0, 0] : f32 from vector<1x1x1xf32>
    %71 = vector.broadcast %70 : f32 to vector<1x8x128xf32>
    %c0_26 = arith.constant 0 : index
    %c0_27 = arith.constant 0 : index
    %c0_28 = arith.constant 0 : index
    %72 = vector.load %arg3[%c0_26, %c0_27, %c0_28] : memref<1x8x128xf32, #tpu.memory_space<vmem>>, vector<1x8x128xf32>
    tpu.vector_store %arg3[%c0_26, %c0_27, %c0_28], %71 {strides = array<i32>} : memref<1x8x128xf32, #tpu.memory_space<vmem>>, vector<1x8x128xf32>,
    return
  }
  func.func @transform_0(%arg0: i32) -> (i32, i32) {
    %c0_i32 = arith.constant 0 : i32
    %c0_i32_0 = arith.constant 0 : i32
    return %arg0, %c0_i32 : i32, i32
  }
  func.func @transform_1(%arg0: i32) -> (i32, i32) {
    %c0_i32 = arith.constant 0 : i32
    %c0_i32_0 = arith.constant 0 : i32
    %c0_i32_1 = arith.constant 0 : i32
    return %c0_i32, %c0_i32_0 : i32, i32
  }
  func.func @transform_2(%arg0: i32) -> (i32, i32, i32) {
    %c0_i32 = arith.constant 0 : i32
    %c0_i32_0 = arith.constant 0 : i32
    %c0_i32_1 = arith.constant 0 : i32
    return %arg0, %c0_i32, %c0_i32_0 : i32, i32, i32
  }
}

</mosaic_0001>

<llo_original>
// kernel: supcon_loss.1
$region0: #{supcon_loss.1}
  #allocation0 [shape = 'u32[]', space=smem, size = 0x4, offset = 0x4, fixed_abs, tag = 'smem constant byte address 0x4 - core index']
  #allocation1 [shape = 'u32[144,128]{1,0:T(1,128)}', space=vmem, size = 0x12000, scoped, tag = 'internal scratch']
  %s0 = inlined_call_operand.vmem [shape: bf16[8,160], index: 0, kind: input, shape index: {}]
  %s1 = inlined_call_operand.vmem [shape: bf16[32,256], index: 1, kind: input, shape index: {}]
  %s2 = inlined_call_operand.vmem [shape: f32[1,8,128], index: 2, kind: output, shape index: {}]
  %s3 = sld [smem:[#allocation0]]
  $region18: #{supcon_loss.1} parent=0
    _
  %s5 = ssub.s32 1, %s3
  %s6 = scalar_select 0, %s5, %s3
  // Predicated region
  $region2: #{supcon_loss.1} parent=0 // pred_check
    _
  $region3: #{supcon_loss.1} parent=0 // pred_check_branch
    %8 = sbr.rel (0) target = $region5
  $region4: #{supcon_loss.1} parent=0 // pred_region
    _
  $region5: #{supcon_loss.1} parent=0 // pred_fallthru
    _
  // Predicated region
  $region6: #{supcon_loss.1} parent=0 // pred_check
    _
  $region7: #{supcon_loss.1} parent=0 // pred_check_branch
    %10 = sbr.rel (0) target = $region9
  $region8: #{supcon_loss.1} parent=0 // pred_region
    _
  $region9: #{supcon_loss.1} parent=0 // pred_fallthru
    _
  %v12 = vld [vmem:[%s0] sm:$0xf]
  %v13 = vunpack.c.l.bf16 %v12
  %v14 = vld [vmem:[%s0 + $0x4] sm:$0xf]
  %v15 = vld [vmem:[%s1] sm:$0xff]
  %v16 = vld [vmem:[%s1 + $0x8] sm:$0xff]
  %v17 = vld [vmem:[%s1 + $0x10] sm:$0xff]
  %v18 = vld [vmem:[%s1 + $0x18] sm:$0xff]
  %v23 = vunpack.c.l.b16 %v15
  %v24 = vunpack.c.h.b16 %v15
  %v25 = vunpack.c.l.b16 %v16
  %v26 = vunpack.c.h.b16 %v16
  %v27 = vunpack.c.l.b16 %v17
  %v28 = vunpack.c.h.b16 %v17
  %v29 = vunpack.c.l.b16 %v18
  %v30 = vunpack.c.h.b16 %v18
  %v31 = vpack.c.b16 %v25, %v23
  %v32 = vpack.c.b16 %v26, %v24
  %v33 = vpack.c.b16 %v29, %v27
  %v34 = vpack.c.b16 %v30, %v28
  %vm39 = vcmask 261120
  %v41 = vsel %vm39, %v14, 0
  %43 = vmatprep.subr.bf16.mxu0 0
  %44 = vmatpush1.bf16.msra.mxu0 0
  %45 = vmatprep.subr.bf16.mxu0 0
  %46 = vmatpush1.bf16.msra.mxu0 0
  %47 = vmatprep.subr.bf16.mxu0 0
  %48 = vmatpush1.bf16.msra.mxu0 0
  %49 = vmatprep.subr.bf16.mxu0 0
  %50 = vmatpush1.bf16.msra.mxu0 0
  %51 = vmatprep.subr.bf16.mxu0 0
  %52 = vmatpush1.bf16.msra.mxu0 0
  %53 = vmatprep.subr.bf16.mxu0 0
  %54 = vmatpush1.bf16.msra.mxu0 0
  %55 = vmatprep.subr.bf16.mxu0 %v34
  %56 = vmatpush1.bf16.msra.mxu0 %v33
  %57 = vmatprep.subr.bf16.mxu0 %v32
  %58 = vmatpush1.bf16.msra.mxu0 %v31
  %59 = vmatprep.subr.bf16.mxu0 0
  %60 = vmatpush2.bf16.msra.mxu0 0
  %61 = vmatprep.subr.bf16.mxu0 0
  %62 = vmatpush2.bf16.msra.mxu0 0
  %63 = vmatprep.subr.bf16.mxu0 0
  %64 = vmatpush2.bf16.msra.mxu0 0
  %65 = vmatprep.subr.bf16.mxu0 0
  %66 = vmatpush2.bf16.msra.mxu0 0
  %67 = vmatprep.subr.bf16.mxu0 0
  %68 = vmatpush2.bf16.msra.mxu0 0
  %69 = vmatprep.subr.bf16.mxu0 0
  %70 = vmatpush2.bf16.msra.mxu0 0
  %71 = vmatprep.subr.bf16.mxu0 0
  %72 = vmatpush2.bf16.msra.mxu0 0
  %73 = vmatprep.subr.bf16.mxu0 0
  %74 = vmatpush2.bf16.msra.mxu0 0
  %75 = vmatprep.mubr.bf16.mxu0 0
  %76 = vmatmul.mubr.bf16.gmra.mxu0 %v41
  %v77 = vpop.f32.mrf.mxu0
  %v78 = vadd.f32 0.0, %v77
  %v79 = vpop.f32.mrf.mxu0
  %v80 = vadd.f32 0.0, %v79
  %v81 = vpop.f32.mrf.mxu0
  %v82 = vpop.f32.mrf.mxu0
  %83 = vdwg.mxu0
  %v84 = vmax.f32 %v78, %v80
  %v85 = vmul.f32 %v84, 10.0
  %v86 = vlaneseq
  %v87 = vand.u32 %v86, 127
  %vm88 = vcmp.lt.s32.totalorder %v87, 5
  %v89 = vsel %vm88, %v85, -1e+30
  %90 = vmax.xlane.f32.xlu0 %v89
  %v91 = vpop.xlane.xlu0 %90
  %v92 = vsub.f32 %v89, %v91
  %v93 = vmul.f32 %v92, 1.442695
  %v94 = vpow.pop %v93
  %95 = vadd.xlane.f32.xlu0 %v94
  %v96 = vpop.xlane.xlu0 %95
  %v97 = vadd.f32 %v96, 1e-07
  %v98 = vlog2.pop %v97
  %v99 = vmul.f32 %v98, 0.6931472
  %vm100 = vcmp.lt.s32.totalorder %v87, 4
  %v101 = vsel %vm100, %v13, -inf
  %102 = vmax.xlane.f32.xlu0 %v101
  %v103 = vpop.xlane.xlu0 %102
  %v104 = vsub.f32 1.0, %v103
  %vm105 = vcmp.gt.f32.partialorder %v13, 0.9
  %vm106 = vcmp.lt.f32.partialorder %v13, 0.9
  %v107 = vsel %vm106, 0.0, %v13
  %v108 = vsel %vm105, 1.0, %v107
  %vm109 = vcmp.eq.s32.totalorder %v87, 4
  %vm110 = vcmp.gt.f32.partialorder %v104, 0.9
  %vm111 = vcmp.lt.f32.partialorder %v104, 0.9
  %v112 = vsel %vm111, 0.0, %v104
  %v113 = vsel %vm110, 1.0, %v112
  %v114 = vsel %vm109, %v113, %v108
  %v115 = vmul.f32 %v114, %v92
  %116 = vadd.xlane.f32.xlu0 %v115
  %v117 = vpop.xlane.xlu0 %116
  %118 = vadd.xlane.f32.xlu0 %v114
  %v119 = vpop.xlane.xlu0 %118
  %v120 = vmul.f32 %v99, %v119
  %v121 = vsub.f32 %v117, %v120
  %v122 = vsub.f32 0.0, %v121
  %v123 = vadd.f32 %v119, 1e-07
  %v124 = vrcp.pop %v123
  %v125 = vmul.f32 %v122, %v124
  %vm126 = vcmask 7168
  %v127 = vsel %vm126, %v125, 0.0
  %128 = vadd.xlane.f32.xlu0 %v127
  %v129 = vpop.xlane.xlu0 %128
  %v130 = vrot.slane %v129, 4
  %v131 = vadd.f32 %v129, %v130
  %v132 = vrot.slane %v131, 2
  %v133 = vadd.f32 %v131, %v132
  %v134 = vrot.slane %v133, 1
  %v135 = vadd.f32 %v133, %v134
  %s136 = vtos %v135
  %v137 = vstv %s136
  %138 = vst [vmem:[%s2] sm:$0xff] %v137
  // Predicated region
  $region10: #{supcon_loss.1} parent=0 // pred_check
    _
  $region11: #{supcon_loss.1} parent=0 // pred_check_branch
    %140 = sbr.rel (0) target = $region13
  $region12: #{supcon_loss.1} parent=0 // pred_region
    _
  $region13: #{supcon_loss.1} parent=0 // pred_fallthru
    _
  // Predicated region
  $region14: #{supcon_loss.1} parent=0 // pred_check
    _
  $region15: #{supcon_loss.1} parent=0 // pred_check_branch
    %142 = sbr.rel (0) target = $region17
  $region16: #{supcon_loss.1} parent=0 // pred_region
    _
  $region17: #{supcon_loss.1} parent=0 // pred_fallthru
    _

</llo_original>
